<compile_context>
chip_gen: v7x
topology: tpu7x:2x2x1
jax: 0.10.0
libtpu: 0.0.40
codegen_flags: <defaults>
</compile_context>

<pallas_src>
import functools
import math

import jax
import jax.numpy as jnp
from jax import lax
from jax.experimental import pallas as pl
from jax.experimental.pallas import tpu as pltpu


def mlp_kernel(n1, n2, n_out, x_ref, w1_ref, w2_ref, w3_ref, b_ref, oT_ref):
    # x tile arrives in its natural (TB, N_sym) layout -- no wrapper transpose.
    x = x_ref[...]                                    # (TB, N_sym) f32

    # Packed bias column: rows [0:n1) -> b1, [n1:n1+n2) -> b2, rest -> b3.
    b1 = b_ref[0:n1, :]                               # (n1, 1) f32
    b2 = b_ref[n1:n1 + n2, :]                         # (n2, 1) f32
    b3 = b_ref[n1 + n2:n1 + n2 + n_out, :]            # (n_out, 1) f32

    cdt = w1_ref.dtype                                # bf16 (or f32 fallback)

    # Layer 1: contract the shared N_sym axis of W1 (n1, N_sym) and x (TB, N_sym)
    # -> (n1, TB).  Any transpose implied here runs in-kernel on the XLU, whose
    # slot is otherwise idle.  bf16 MXU operands, f32 accumulation.
    h = lax.dot_general(
        w1_ref[...], x.astype(cdt),
        dimension_numbers=(((1,), (1,)), ((), ())),
        preferred_element_type=jnp.float32)           # (n1, TB)
    h = jnp.tanh(h + b1)                              # bias/tanh in f32 (v5e-safe)

    # Layer 2: Linear + Tanh in (features, TB) batch-in-lanes layout.
    h = jnp.dot(w2_ref[...], h.astype(cdt), preferred_element_type=jnp.float32)
    h = jnp.tanh(h + b2)

    # Output layer: Linear (no activation, matches the module's final Linear).
    y = jnp.dot(w3_ref[...], h.astype(cdt), preferred_element_type=jnp.float32)
    y = y + b3

    oT_ref[...] = y.astype(oT_ref.dtype)              # (n_out, TB) lane-dense store


def multilayer_net(x, params, *, block_b=4096, compute_dtype=jnp.bfloat16):
    """Fused forward pass of the 2-hidden-layer MLP in a single Pallas kernel.

    x:      (B, N_sym) float32
    params: (w1, b1, w2, b2, w3, b3) with weights in PyTorch layout
            (out_features, in_features) and biases of shape (out_features,).
    Returns (B, N_element) float32.
    """
    w1, b1, w2, b2, w3, b3 = params
    B, n_sym = x.shape
    n1, n2, n_out = w1.shape[0], w2.shape[0], w3.shape[0]

    # --- cheap layout plumbing (outside the kernel) -------------------------
    w1c = w1.astype(compute_dtype)                     # cast once; VMEM-resident
    w2c = w2.astype(compute_dtype)
    w3c = w3.astype(compute_dtype)
    b_packed = jnp.concatenate(
        [b1.reshape(-1), b2.reshape(-1), b3.reshape(-1)]
    ).astype(jnp.float32)[:, None]                     # (n1+n2+n_out, 1)

    # --- batch tile selection -----------------------------------------------
    # Lane dim of the output block must be a multiple of 128 (or the full B).
    # Force >=2 grid steps when B > 128 so ("parallel",) shards across the two
    # TensorCores on v7x (no effect on v5e/v6e, which have a single TC).
    tb_cap = max(128, (block_b // 128) * 128)
    if B <= 128:
        tb = B                                         # single small tile
    else:
        half = -(-B // 2)                              # cdiv(B, 2)
        tb = min(tb_cap, ((half + 127) // 128) * 128)
    nb = pl.cdiv(B, tb)

    # Advisory cost hint so XLA schedules surrounding ops around the call.
    itemsize = jnp.dtype(compute_dtype).itemsize
    flops = 2 * B * (n_sym * n1 + n1 * n2 + n2 * n_out)
    transcendentals = B * (n1 + n2)
    bytes_accessed = (
        B * n_sym * 4                                   # x (f32 in)
        + (n_sym * n1 + n1 * n2 + n2 * n_out) * itemsize  # weights (resident)
        + (n1 + n2 + n_out) * 4                         # packed bias
        + n_out * B * 4)                                # output (f32)

    resident = lambda a: pl.BlockSpec(a.shape, lambda i: (0, 0))
    kernel = functools.partial(mlp_kernel, n1, n2, n_out)

    oT = pl.pallas_call(
        kernel,
        out_shape=jax.ShapeDtypeStruct((n_out, B), x.dtype),
        grid=(nb,),
        in_specs=[
            pl.BlockSpec((tb, n_sym), lambda i: (i, 0)),   # streamed x tile (no x.T)
            resident(w1c),
            resident(w2c),
            resident(w3c),
            resident(b_packed),
        ],
        out_specs=pl.BlockSpec((n_out, tb), lambda i: (0, i)),
        compiler_params=pltpu.CompilerParams(
            dimension_semantics=("parallel",),             # megacore on v7x
        ),
        cost_estimate=pl.CostEstimate(
            flops=flops,
            transcendentals=transcendentals,
            bytes_accessed=bytes_accessed,
        ),
    )(x, w1c, w2c, w3c, b_packed)

    # Keep the lane-dense (n_out, TB) kernel store; this single transpose back
    # to (B, n_out) is cheap relative to the input stream.
    return oT.T


def init_linear(key, fan_in, fan_out):
    """Deterministic init mimicking torch.nn.Linear (uniform +-1/sqrt(fan_in)).
    Weight in PyTorch layout (out_features, in_features); bias (out_features,)."""
    kw, kb = jax.random.split(key)
    bound = 1.0 / math.sqrt(fan_in)
    w = jax.random.uniform(kw, (fan_out, fan_in), jnp.float32, -bound, bound)
    b = jax.random.uniform(kb, (fan_out,), jnp.float32, -bound, bound)
    return w, b


if __name__ == "__main__":
    # Module configuration: N_sym=32, n_nodes=(32, 32), activations=[Tanh, Tanh],
    # N_element=4, bias=True, scaling=None (scaling is unused in forward()).
    N_sym, n_nodes, N_element = 32, (32, 32), 4
    batch = 256                      # gives a 2-step batch grid (TB=128)

    key = jax.random.PRNGKey(0)
    k_x, k1, k2, k3 = jax.random.split(key, 4)

    x = jax.random.normal(k_x, (batch, N_sym), jnp.float32)
    w1, b1 = init_linear(k1, N_sym, n_nodes[0])
    w2, b2 = init_linear(k2, n_nodes[0], n_nodes[1])
    w3, b3 = init_linear(k3, n_nodes[1], N_element)
    params = (w1, b1, w2, b2, w3, b3)

    # Reference: plain JAX, same math as the PyTorch module (f32).
    h = jnp.tanh(x @ w1.T + b1)
    h = jnp.tanh(h @ w2.T + b2)
    y_ref = h @ w3.T + b3

    # Exact check on the f32 compute path.
    y_f32 = jax.block_until_ready(
        multilayer_net(x, params, compute_dtype=jnp.float32))
    assert y_f32.shape == (batch, N_element)
    assert jnp.allclose(y_f32, y_ref, atol=1e-5, rtol=1e-5)

    # Default bf16-MXU path: loose tolerance (bf16 operand quantization only;
    # accumulation stays f32).
    y = jax.block_until_ready(multilayer_net(x, params))
    assert y.shape == (batch, N_element)
    assert jnp.allclose(y, y_ref, atol=3e-2, rtol=3e-2)

    print("KERNEL_OK")
</pallas_src>

<mosaic_0001>
module attributes {stable_mosaic.version = 11 : i64} {
  func.func @mlp_kernel(%arg0: i32, %arg1: memref<128x32xf32, #tpu.memory_space<vmem>>, %arg2: memref<32x32xf32, #tpu.memory_space<vmem>>, %arg3: memref<32x32xf32, #tpu.memory_space<vmem>>, %arg4: memref<4x32xf32, #tpu.memory_space<vmem>>, %arg5: memref<68x1xf32, #tpu.memory_space<vmem>>, %arg6: memref<4x128xf32, #tpu.memory_space<vmem>>) attributes {dimension_semantics = [#tpu.dimension_semantics<parallel>], iteration_bounds = array<i64: 2>, scalar_prefetch = 0 : i64, scratch_operands = 0 : i64, tpu.core_type = #tpu.core_type<tc>, window_params = [{transform_indices = @transform_0, window_bounds = array<i64: 128, 32>}, {pipeline_mode = #tpu.pipeline_mode<synchronous>, transform_indices = @transform_1, window_bounds = array<i64: 32, 32>}, {pipeline_mode = #tpu.pipeline_mode<synchronous>, transform_indices = @transform_2, window_bounds = array<i64: 32, 32>}, {pipeline_mode = #tpu.pipeline_mode<synchronous>, transform_indices = @transform_3, window_bounds = array<i64: 4, 32>}, {pipeline_mode = #tpu.pipeline_mode<synchronous>, transform_indices = @transform_4, window_bounds = array<i64: 68, 1>}, {transform_indices = @transform_5, window_bounds = array<i64: 4, 128>}]} {
    %c0 = arith.constant 0 : index
    %c0_0 = arith.constant 0 : index
    %0 = vector.load %arg1[%c0, %c0_0] : memref<128x32xf32, #tpu.memory_space<vmem>>, vector<128x32xf32>
    %c0_1 = arith.constant 0 : index
    %c0_2 = arith.constant 0 : index
    %1 = vector.load %arg5[%c0_1, %c0_2] : memref<68x1xf32, #tpu.memory_space<vmem>>, vector<32x1xf32>
    %c32 = arith.constant 32 : index
    %c0_3 = arith.constant 0 : index
    %2 = vector.load %arg5[%c32, %c0_3] : memref<68x1xf32, #tpu.memory_space<vmem>>, vector<32x1xf32>
    %c64 = arith.constant 64 : index
    %c0_4 = arith.constant 0 : index
    %3 = vector.load %arg5[%c64, %c0_4] : memref<68x1xf32, #tpu.memory_space<vmem>>, vector<4x1xf32>
    %c0_5 = arith.constant 0 : index
    %c0_6 = arith.constant 0 : index
    %4 = vector.load %arg2[%c0_5, %c0_6] : memref<32x32xf32, #tpu.memory_space<vmem>>, vector<32x32xf32>
    %cst = arith.constant dense<0.000000e+00> : vector<32x128xf32>
    %5 = tpu.matmul %4, %0, %cst {dimension_numbers = #tpu.dot_dimension_numbers<[1], [1], [0], [0], [0, 0, 1, 0], [], []>} : vector<32x32xf32>, vector<128x32xf32>, vector<32x128xf32> -> vector<32x128xf32>
    %6 = vector.broadcast %1 : vector<32x1xf32> to vector<32x128xf32>
    %7 = arith.addf %5, %6 : vector<32x128xf32>
    %8 = math.tanh %7 : vector<32x128xf32>
    %c0_7 = arith.constant 0 : index
    %c0_8 = arith.constant 0 : index
    %9 = vector.load %arg3[%c0_7, %c0_8] : memref<32x32xf32, #tpu.memory_space<vmem>>, vector<32x32xf32>
    %cst_9 = arith.constant dense<0.000000e+00> : vector<32x128xf32>
    %10 = tpu.matmul %9, %8, %cst_9 {dimension_numbers = #tpu.dot_dimension_numbers<[1], [0], [0], [1], [0, 0, 1, 1], [], []>} : vector<32x32xf32>, vector<32x128xf32>, vector<32x128xf32> -> vector<32x128xf32>
    %11 = vector.broadcast %2 : vector<32x1xf32> to vector<32x128xf32>
    %12 = arith.addf %10, %11 : vector<32x128xf32>
    %13 = math.tanh %12 : vector<32x128xf32>
    %c0_10 = arith.constant 0 : index
    %c0_11 = arith.constant 0 : index
    %14 = vector.load %arg4[%c0_10, %c0_11] : memref<4x32xf32, #tpu.memory_space<vmem>>, vector<4x32xf32>
    %cst_12 = arith.constant dense<0.000000e+00> : vector<4x128xf32>
    %15 = tpu.matmul %14, %13, %cst_12 {dimension_numbers = #tpu.dot_dimension_numbers<[1], [0], [0], [1], [0, 0, 1, 1], [], []>} : vector<4x32xf32>, vector<32x128xf32>, vector<4x128xf32> -> vector<4x128xf32>
    %16 = vector.broadcast %3 : vector<4x1xf32> to vector<4x128xf32>
    %17 = arith.addf %15, %16 : vector<4x128xf32>
    %c0_13 = arith.constant 0 : index
    %c0_14 = arith.constant 0 : index
    %18 = vector.load %arg6[%c0_13, %c0_14] : memref<4x128xf32, #tpu.memory_space<vmem>>, vector<4x128xf32>
    tpu.vector_store %arg6[%c0_13, %c0_14], %17 {strides = array<i32>} : memref<4x128xf32, #tpu.memory_space<vmem>>, vector<4x128xf32>,
    return
  }
  func.func @transform_0(%arg0: i32) -> (i32, i32) {
    %c0_i32 = arith.constant 0 : i32
    %c0_i32_0 = arith.constant 0 : i32
    return %arg0, %c0_i32 : i32, i32
  }
  func.func @transform_1(%arg0: i32) -> (i32, i32) {
    %c0_i32 = arith.constant 0 : i32
    %c0_i32_0 = arith.constant 0 : i32
    %c0_i32_1 = arith.constant 0 : i32
    return %c0_i32, %c0_i32_0 : i32, i32
  }
  func.func @transform_2(%arg0: i32) -> (i32, i32) {
    %c0_i32 = arith.constant 0 : i32
    %c0_i32_0 = arith.constant 0 : i32
    %c0_i32_1 = arith.constant 0 : i32
    return %c0_i32, %c0_i32_0 : i32, i32
  }
  func.func @transform_3(%arg0: i32) -> (i32, i32) {
    %c0_i32 = arith.constant 0 : i32
    %c0_i32_0 = arith.constant 0 : i32
    %c0_i32_1 = arith.constant 0 : i32
    return %c0_i32, %c0_i32_0 : i32, i32
  }
  func.func @transform_4(%arg0: i32) -> (i32, i32) {
    %c0_i32 = arith.constant 0 : i32
    %c0_i32_0 = arith.constant 0 : i32
    %c0_i32_1 = arith.constant 0 : i32
    return %c0_i32, %c0_i32_0 : i32, i32
  }
  func.func @transform_5(%arg0: i32) -> (i32, i32) {
    %c0_i32 = arith.constant 0 : i32
    %c0_i32_0 = arith.constant 0 : i32
    return %c0_i32, %arg0 : i32, i32
  }
}

</mosaic_0001>

<llo_original>
// kernel: tpu_custom_call.1
$region0: #{tpu_custom_call.1}
  #allocation0 [shape = 'u32[]', space=smem, size = 0x4, offset = 0x4, fixed_abs, tag = 'smem constant byte address 0x4 - core index']
  #allocation1 [shape = 'u32[144,128]{1,0:T(1,128)}', space=vmem, size = 0x12000, scoped, tag = 'internal scratch']
  %s0 = inlined_call_operand.vmem [shape: f32[256,32], index: 0, kind: input, shape index: {}]
  %s1 = inlined_call_operand.vmem [shape: f32[32,32], index: 1, kind: input, shape index: {}]
  %s2 = inlined_call_operand.vmem [shape: f32[32,32], index: 2, kind: input, shape index: {}]
  %s3 = inlined_call_operand.vmem [shape: f32[4,32], index: 3, kind: input, shape index: {}]
  %s4 = inlined_call_operand.vmem [shape: f32[68,1], index: 4, kind: input, shape index: {}]
  %s5 = inlined_call_operand.hbm [shape: f32[4,256], index: 5, kind: output, shape index: {}]
  %s6 = sld [smem:[#allocation0]]
  $region53: #{tpu_custom_call.1} parent=0
    _
  %s8 = ssub.s32 1, %s6
  %s9 = scalar_select 0, %s8, %s6
  $region1: #{tpu_custom_call.1} parent=0
    #allocation2 [shape = 'u8[4096]{0}', space=vmem, size = 0x1000, scoped, tag = 'output window, operand 0']
    #allocation3 [shape = 's32[2]{0}', space=sflag, size = 0x8, scoped, tag = 'scoped memory for tpu_custom_call.1']
    %10 = vsyncpa [#allocation3], 0
    %s11 = scalar_lea.sflag [#allocation3], 1
    %12 = vsyncpa %s11, 0
    loop: start=0, step=1, limit=4
    $region2: #{tpu_custom_call.1} parent=1 // loop_pre_header
      _
    $region3: #{tpu_custom_call.1} parent=1 // loop_header
      %s14 = sphi 0, %s18
      %p15 = scmp.ge.s32.totalorder %s14, 4
      %s24 = sphi 0, %s26
      %s27 = sphi 0, %s24
      %s28 = sphi 0, %s27
      %s44 = sphi 0, %s28
      %s48 = sphi 0, %s48
      %s50 = sphi 0, %s48
      %s51 = sphi 0, %s50
      %s65 = sphi 0, %s51
      %s69 = sphi 0, %s69
      %s71 = sphi 0, %s69
      %s72 = sphi 0, %s71
      %s86 = sphi 0, %s72
      %s90 = sphi 0, %s90
      %s92 = sphi 0, %s90
      %s93 = sphi 0, %s92
      %s107 = sphi 0, %s93
      %s111 = sphi 0, %s111
      %s113 = sphi 0, %s111
      %s114 = sphi 0, %s113
      %s128 = sphi 0, %s114
      %s134 = sphi 0, %s136
      %s137 = sphi 0, %s134
      %s138 = sphi 0, %s137
      %s154 = sphi 0, %s138
    $region4: #{tpu_custom_call.1} parent=1 // loop_header_branch
      %17 = sbr.rel (%p15) target = $region8
    $region5: #{tpu_custom_call.1} parent=1 // loop_body
      %s19 = ssub.s32 %s14, 1
      %s20 = ssub.s32 %s14, 2
      %s21 = sadd.s32 %s14, 1
      %s22 = ssub.s32 %s14, %s21
      %p23 = scmp.eq.s32.totalorder %s22, 0
      %s25 = sadd.s32 %s24, 1
      %s26 = scalar_select %p23, %s24, %s25
      %p29 = pneg %p23
      %p30 = scmp.eq.s32.totalorder %s14, 1
      %p31 = por %p29, %p30
      %p32 = scmp.ne.s32.totalorder %s24, %s27
      %p33 = scmp.eq.s32.totalorder %s14, 0
      %p34 = por %p32, %p33
      %p35 = scmp.ne.s32.totalorder %s24, %s27
      %p36 = scmp.eq.s32.totalorder %s19, 1
      %p37 = por %p35, %p36
      %p38 = scmp.ne.s32.totalorder %s27, %s28
      %p39 = scmp.eq.s32.totalorder %s19, 0
      %p40 = por %p38, %p39
      %p41 = scmp.ne.s32.totalorder %s27, %s28
      %p42 = scmp.eq.s32.totalorder %s20, 1
      %p43 = por %p41, %p42
      %p45 = scmp.ne.s32.totalorder %s28, %s44
      %p46 = scmp.eq.s32.totalorder %s20, 0
      %p47 = por %p45, %p46
      %s49 = sadd.s32 %s48, 1
      %p52 = scmp.eq.s32.totalorder %s14, 1
      %p53 = scmp.ne.s32.totalorder %s48, %s50
      %p54 = scmp.eq.s32.totalorder %s14, 0
      %p55 = por %p53, %p54
      %p56 = scmp.ne.s32.totalorder %s48, %s50
      %p57 = scmp.eq.s32.totalorder %s19, 1
      %p58 = por %p56, %p57
      %p59 = scmp.ne.s32.totalorder %s50, %s51
      %p60 = scmp.eq.s32.totalorder %s19, 0
      %p61 = por %p59, %p60
      %p62 = scmp.ne.s32.totalorder %s50, %s51
      %p63 = scmp.eq.s32.totalorder %s20, 1
      %p64 = por %p62, %p63
      %p66 = scmp.ne.s32.totalorder %s51, %s65
      %p67 = scmp.eq.s32.totalorder %s20, 0
      %p68 = por %p66, %p67
      %s70 = sadd.s32 %s69, 1
      %p73 = scmp.eq.s32.totalorder %s14, 1
      %p74 = scmp.ne.s32.totalorder %s69, %s71
      %p75 = scmp.eq.s32.totalorder %s14, 0
      %p76 = por %p74, %p75
      %p77 = scmp.ne.s32.totalorder %s69, %s71
      %p78 = scmp.eq.s32.totalorder %s19, 1
      %p79 = por %p77, %p78
      %p80 = scmp.ne.s32.totalorder %s71, %s72
      %p81 = scmp.eq.s32.totalorder %s19, 0
      %p82 = por %p80, %p81
      %p83 = scmp.ne.s32.totalorder %s71, %s72
      %p84 = scmp.eq.s32.totalorder %s20, 1
      %p85 = por %p83, %p84
      %p87 = scmp.ne.s32.totalorder %s72, %s86
      %p88 = scmp.eq.s32.totalorder %s20, 0
      %p89 = por %p87, %p88
      %s91 = sadd.s32 %s90, 1
      %p94 = scmp.eq.s32.totalorder %s14, 1
      %p95 = scmp.ne.s32.totalorder %s90, %s92
      %p96 = scmp.eq.s32.totalorder %s14, 0
      %p97 = por %p95, %p96
      %p98 = scmp.ne.s32.totalorder %s90, %s92
      %p99 = scmp.eq.s32.totalorder %s19, 1
      %p100 = por %p98, %p99
      %p101 = scmp.ne.s32.totalorder %s92, %s93
      %p102 = scmp.eq.s32.totalorder %s19, 0
      %p103 = por %p101, %p102
      %p104 = scmp.ne.s32.totalorder %s92, %s93
      %p105 = scmp.eq.s32.totalorder %s20, 1
      %p106 = por %p104, %p105
      %p108 = scmp.ne.s32.totalorder %s93, %s107
      %p109 = scmp.eq.s32.totalorder %s20, 0
      %p110 = por %p108, %p109
      %s112 = sadd.s32 %s111, 1
      %p115 = scmp.eq.s32.totalorder %s14, 1
      %p116 = scmp.ne.s32.totalorder %s111, %s113
      %p117 = scmp.eq.s32.totalorder %s14, 0
      %p118 = por %p116, %p117
      %p119 = scmp.ne.s32.totalorder %s111, %s113
      %p120 = scmp.eq.s32.totalorder %s19, 1
      %p121 = por %p119, %p120
      %p122 = scmp.ne.s32.totalorder %s113, %s114
      %p123 = scmp.eq.s32.totalorder %s19, 0
      %p124 = por %p122, %p123
      %p125 = scmp.ne.s32.totalorder %s113, %s114
      %p126 = scmp.eq.s32.totalorder %s20, 1
      %p127 = por %p125, %p126
      %p129 = scmp.ne.s32.totalorder %s114, %s128
      %p130 = scmp.eq.s32.totalorder %s20, 0
      %p131 = por %p129, %p130
      %s132 = ssub.s32 %s14, %s21
      %p133 = scmp.eq.s32.totalorder %s132, 0
      %s135 = sadd.s32 %s134, 1
      %s136 = scalar_select %p133, %s134, %s135
      %p139 = pneg %p133
      %p140 = scmp.eq.s32.totalorder %s14, 1
      %p141 = por %p139, %p140
      %p142 = scmp.ne.s32.totalorder %s134, %s137
      %p143 = scmp.eq.s32.totalorder %s14, 0
      %p144 = por %p142, %p143
      %p145 = scmp.ne.s32.totalorder %s134, %s137
      %p146 = scmp.eq.s32.totalorder %s19, 1
      %p147 = por %p145, %p146
      %p148 = scmp.ne.s32.totalorder %s137, %s138
      %p149 = scmp.eq.s32.totalorder %s19, 0
      %p150 = por %p148, %p149
      %p151 = scmp.ne.s32.totalorder %s137, %s138
      %p152 = scmp.eq.s32.totalorder %s20, 1
      %p153 = por %p151, %p152
      %p155 = scmp.ne.s32.totalorder %s138, %s154
      %p156 = scmp.eq.s32.totalorder %s20, 0
      %p157 = por %p155, %p156
      %p158 = scmp.le.s32.totalorder 1, %s14
      %p159 = scmp.lt.s32.totalorder %s14, 3
      %p160 = pnand %p158, %p159
      %p161 = pneg %p160
      // Predicated region
      $region9: #{tpu_custom_call.1} parent=5 // pred_check
        _
      $region10: #{tpu_custom_call.1} parent=5 // pred_check_branch
        %163 = sbr.rel (%p160) target = $region12
      $region11: #{tpu_custom_call.1} parent=5 // pred_region
        %s164 = ssub.s32 %s14, 1
        // Predicated region
        $region13: #{tpu_custom_call.1} parent=11 // pred_check
          %p165 = pneg %p61
        $region14: #{tpu_custom_call.1} parent=11 // pred_check_branch
          %167 = sbr.rel (%p165) target = $region16
        $region15: #{tpu_custom_call.1} parent=11 // pred_region
          _
        $region16: #{tpu_custom_call.1} parent=11 // pred_fallthru
          _
        // Predicated region
        $region17: #{tpu_custom_call.1} parent=11 // pred_check
          %p168 = pneg %p82
        $region18: #{tpu_custom_call.1} parent=11 // pred_check_branch
          %170 = sbr.rel (%p168) target = $region20
        $region19: #{tpu_custom_call.1} parent=11 // pred_region
          _
        $region20: #{tpu_custom_call.1} parent=11 // pred_fallthru
          _
        // Predicated region
        $region21: #{tpu_custom_call.1} parent=11 // pred_check
          %p171 = pneg %p103
        $region22: #{tpu_custom_call.1} parent=11 // pred_check_branch
          %173 = sbr.rel (%p171) target = $region24
        $region23: #{tpu_custom_call.1} parent=11 // pred_region
          _
        $region24: #{tpu_custom_call.1} parent=11 // pred_fallthru
          _
        // Predicated region
        $region25: #{tpu_custom_call.1} parent=11 // pred_check
          %p174 = pneg %p124
        $region26: #{tpu_custom_call.1} parent=11 // pred_check_branch
          %176 = sbr.rel (%p174) target = $region28
        $region27: #{tpu_custom_call.1} parent=11 // pred_region
          _
        $region28: #{tpu_custom_call.1} parent=11 // pred_fallthru
          _
      $region12: #{tpu_custom_call.1} parent=5 // pred_fallthru
        _
      %p177 = scmp.lt.s32.totalorder %s14, 2
      // Predicated region
      $region29: #{tpu_custom_call.1} parent=5 // pred_check
        %p178 = pneg %p177
      $region30: #{tpu_custom_call.1} parent=5 // pred_check_branch
        %180 = sbr.rel (%p178) target = $region32
      $region31: #{tpu_custom_call.1} parent=5 // pred_region
        // Predicated region
        $region33: #{tpu_custom_call.1} parent=31 // pred_check
          %p181 = pneg %p34
        $region34: #{tpu_custom_call.1} parent=31 // pred_check_branch
          %183 = sbr.rel (%p181) target = $region36
        $region35: #{tpu_custom_call.1} parent=31 // pred_region
          %s184 = smul.u32 16, %s14
          %p185 = scmp.lt.s32.totalorder %s184, 31
          %s186 = scalar_select %p185, %s184, 31
          %s187 = smul.addr %s186, 8
          %s188 = scalar_lea.vmem %s0, %s187
          %s189 = smul.u32 16, %s14
        $region36: #{tpu_custom_call.1} parent=31 // pred_fallthru
          _
      $region32: #{tpu_custom_call.1} parent=5 // pred_fallthru
        _
      %p190 = scmp.le.s32.totalorder 1, %s14
      %p191 = scmp.lt.s32.totalorder %s14, 3
      %p192 = pnand %p190, %p191
      %p193 = pneg %p192
      // Predicated region
      $region37: #{tpu_custom_call.1} parent=5 // pred_check
        _
      $region38: #{tpu_custom_call.1} parent=5 // pred_check_branch
        %195 = sbr.rel (%p192) target = $region40
      $region39: #{tpu_custom_call.1} parent=5 // pred_region
        %s196 = ssub.s32 %s14, 1
        %s197 = smul.u32 16, %s19
        %p198 = scmp.lt.s32.totalorder %s197, 31
        %s199 = scalar_select %p198, %s197, 31
        %s200 = smul.addr %s199, 8
        %s201 = scalar_lea.vmem %s0, %s200
        %p202 = pneg %p40
        %p203 = pneg %p37
        %p204 = pneg %p61
        %p205 = pneg %p58
        %p206 = pneg %p82
        %p207 = pneg %p79
        %p208 = pneg %p103
        %p209 = pneg %p100
        %p210 = pneg %p124
        %p211 = pneg %p121
        %p212 = pneg %p150
        %p213 = pneg %p147
        %s214 = sand.u32 %s137, 1
        %s215 = scalar_lea.sflag [#allocation3], %s214
        %s216 = sand.u32 %s137, 1
        %s217 = smul.addr %s216, 4
        %s218 = scalar_lea.vmem [#allocation2], %s217
        %s219 = smul.u32 16, %s19
        %p220 = scmp.lt.s32.totalorder %s219, 31
        %s221 = scalar_select %p220, %s219, 31
        %s222 = smul.addr %s221, 8
        %s223 = scalar_lea.vmem %s0, %s222
        %s224 = smul.u32 16, %s19
        %v225 = vld [vmem:[%s223] sm:$0xff]
        %v226 = vld [vmem:[%s223 + $0x8] sm:$0xff]
        %v227 = vld [vmem:[%s223 + $0x10] sm:$0xff]
        %v228 = vld [vmem:[%s223 + $0x18] sm:$0xff]
        %v229 = vld [vmem:[%s223 + $0x20] sm:$0xff]
        %v230 = vld [vmem:[%s223 + $0x28] sm:$0xff]
        %v231 = vld [vmem:[%s223 + $0x30] sm:$0xff]
        %v232 = vld [vmem:[%s223 + $0x38] sm:$0xff]
        %v233 = vld [vmem:[%s223 + $0x40] sm:$0xff]
        %v234 = vld [vmem:[%s223 + $0x48] sm:$0xff]
        %v235 = vld [vmem:[%s223 + $0x50] sm:$0xff]
        %v236 = vld [vmem:[%s223 + $0x58] sm:$0xff]
        %v237 = vld [vmem:[%s223 + $0x60] sm:$0xff]
        %v238 = vld [vmem:[%s223 + $0x68] sm:$0xff]
        %v239 = vld [vmem:[%s223 + $0x70] sm:$0xff]
        %v240 = vld [vmem:[%s223 + $0x78] sm:$0xff]
        %v241 = vld [vmem:[%s4] sm:$0xff]
        %v242 = vld [vmem:[%s4 + $0x8] sm:$0xff]
        %v243 = vld [vmem:[%s4 + $0x10] sm:$0xff]
        %v244 = vld [vmem:[%s4 + $0x18] sm:$0xff]
        %v245 = vld [vmem:[%s4 + $0x20] sm:$0xff]
        %v246 = vld [vmem:[%s4 + $0x28] sm:$0xff]
        %v247 = vld [vmem:[%s4 + $0x30] sm:$0xff]
        %v248 = vld [vmem:[%s4 + $0x38] sm:$0xff]
        %v249 = vld [vmem:[%s4 + $0x40] sm:$0xf]
        %v250 = vld [vmem:[%s1] sm:$0xff]
        %v251 = vld [vmem:[%s1 + $0x8] sm:$0xff]
        %v252 = vld [vmem:[%s1 + $0x10] sm:$0xff]
        %v253 = vld [vmem:[%s1 + $0x18] sm:$0xff]
        %255 = vset.pattern.permute.xlu0 0
        %256 = vperm.xlu0 %255, %v241
        %v257 = vpop.permute.xlu0 %256
        %260 = vset.pattern.permute.xlu0 0
        %261 = vperm.xlu0 %260, %v242
        %v262 = vpop.permute.xlu0 %261
        %265 = vset.pattern.permute.xlu0 0
        %266 = vperm.xlu0 %265, %v243
        %v267 = vpop.permute.xlu0 %266
        %270 = vset.pattern.permute.xlu0 0
        %271 = vperm.xlu0 %270, %v244
        %v272 = vpop.permute.xlu0 %271
        %vm274 = vcmask 261120
        %v276 = vsel %vm274, %v250, 0
        %v279 = vsel %vm274, %v251, 0
        %v282 = vsel %vm274, %v252, 0
        %v285 = vsel %vm274, %v253, 0
        %v288 = vsel %vm274, %v225, 0
        %v291 = vsel %vm274, %v226, 0
        %v294 = vsel %vm274, %v227, 0
        %v297 = vsel %vm274, %v228, 0
        %v300 = vsel %vm274, %v229, 0
        %v303 = vsel %vm274, %v230, 0
        %v306 = vsel %vm274, %v231, 0
        %v309 = vsel %vm274, %v232, 0
        %v312 = vsel %vm274, %v233, 0
        %v315 = vsel %vm274, %v234, 0
        %v318 = vsel %vm274, %v235, 0
        %v321 = vsel %vm274, %v236, 0
        %v324 = vsel %vm274, %v237, 0
        %v327 = vsel %vm274, %v238, 0
        %v330 = vsel %vm274, %v239, 0
        %v333 = vsel %vm274, %v240, 0
        %335 = vmatprep.subr.mxu0 0.0
        %336 = vmatpush1.xpose.msra.mxu0 %v288
        %337 = vmatprep.subr.mxu0 0.0
        %338 = vmatpush1.xpose.msra.mxu0 %v291
        %339 = vmatprep.subr.mxu0 0.0
        %340 = vmatpush1.xpose.msra.mxu0 %v294
        %341 = vmatprep.subr.mxu0 0.0
        %342 = vmatpush1.xpose.msra.mxu0 %v297
        %343 = vmatprep.subr.mxu0 0.0
        %344 = vmatpush1.xpose.msra.mxu0 %v300
        %345 = vmatprep.subr.mxu0 0.0
        %346 = vmatpush1.xpose.msra.mxu0 %v303
        %347 = vmatprep.subr.mxu0 0.0
        %348 = vmatpush1.xpose.msra.mxu0 %v306
        %349 = vmatprep.subr.mxu0 0.0
        %350 = vmatpush1.xpose.msra.mxu0 %v309
        %351 = vmatprep.subr.mxu0 0.0
        %352 = vmatpush1.xpose.msra.mxu0 %v312
        %353 = vmatprep.subr.mxu0 0.0
        %354 = vmatpush1.xpose.msra.mxu0 %v315
        %355 = vmatprep.subr.mxu0 0.0
        %356 = vmatpush1.xpose.msra.mxu0 %v318
        %357 = vmatprep.subr.mxu0 0.0
        %358 = vmatpush1.xpose.msra.mxu0 %v321
        %359 = vmatprep.subr.mxu0 0.0
        %360 = vmatpush1.xpose.msra.mxu0 %v324
        %361 = vmatprep.subr.mxu0 0.0
        %362 = vmatpush1.xpose.msra.mxu0 %v327
        %363 = vmatprep.subr.mxu0 0.0
        %364 = vmatpush1.xpose.msra.mxu0 %v330
        %365 = vmatprep.subr.mxu0 0.0
        %366 = vmatpush1.xpose.msra.mxu0 %v333
        %367 = vmatprep.subr.mxu0 0.0
        %368 = vmatpush1.xpose.msra.mxu0 0.0
        %369 = vmatprep.subr.mxu0 0.0
        %370 = vmatpush1.xpose.msra.mxu0 0.0
        %371 = vmatprep.subr.mxu0 0.0
        %372 = vmatpush1.xpose.msra.mxu0 0.0
        %373 = vmatprep.subr.mxu0 0.0
        %374 = vmatpush1.xpose.msra.mxu0 0.0
        %375 = vmatprep.subr.mxu0 0.0
        %376 = vmatpush1.xpose.msra.mxu0 0.0
        %377 = vmatprep.subr.mxu0 0.0
        %378 = vmatpush1.xpose.msra.mxu0 0.0
        %379 = vmatprep.subr.mxu0 0.0
        %380 = vmatpush1.xpose.msra.mxu0 0.0
        %381 = vmatprep.subr.mxu0 0.0
        %382 = vmatpush1.xpose.msra.mxu0 0.0
        %383 = vmatprep.subr.mxu0 0.0
        %384 = vmatpush1.xpose.msra.mxu0 0.0
        %385 = vmatprep.subr.mxu0 0.0
        %386 = vmatpush1.xpose.msra.mxu0 0.0
        %387 = vmatprep.subr.mxu0 0.0
        %388 = vmatpush1.xpose.msra.mxu0 0.0
        %389 = vmatprep.subr.mxu0 0.0
        %390 = vmatpush1.xpose.msra.mxu0 0.0
        %391 = vmatprep.subr.mxu0 0.0
        %392 = vmatpush1.xpose.msra.mxu0 0.0
        %393 = vmatprep.subr.mxu0 0.0
        %394 = vmatpush1.xpose.msra.mxu0 0.0
        %395 = vmatprep.subr.mxu0 0.0
        %396 = vmatpush1.xpose.msra.mxu0 0.0
        %397 = vmatprep.subr.mxu0 0.0
        %398 = vmatpush1.xpose.msra.mxu0 0.0
        %399 = vmatprep.mubr.f32.mxu0 0.0
        %400 = vmatmul.mubr.f32.gmra.mrb[0].mxu0 %v276
        %v401 = vpop.f32.mrb[0].mxu0
        %v402 = vadd.f32 %v257, %v401
        %v403 = vpop.f32.mrb[0].mxu0
        %404 = vmatprep.mubr.f32.mxu0 0.0
        %405 = vmatmul.mubr.f32.gmra.mrb[0].mxu0 %v279
        %v406 = vpop.f32.mrb[0].mxu0
        %v407 = vadd.f32 %v262, %v406
        %v408 = vpop.f32.mrb[0].mxu0
        %409 = vmatprep.mubr.f32.mxu0 0.0
        %410 = vmatmul.mubr.f32.gmra.mrb[0].mxu0 %v282
        %v411 = vpop.f32.mrb[0].mxu0
        %v412 = vadd.f32 %v267, %v411
        %v413 = vpop.f32.mrb[0].mxu0
        %414 = vmatprep.mubr.f32.mxu0 0.0
        %415 = vmatmul.mubr.f32.gmra.mrb[0].mxu0 %v285
        %v416 = vpop.f32.mrb[0].mxu0
        %v417 = vadd.f32 %v272, %v416
        %v418 = vpop.f32.mrb[0].mxu0
        %419 = vdwg.mxu0
        %v420 = vtanh.pop %v402
        %v421 = vtanh.pop %v407
        %v422 = vtanh.pop %v412
        %v423 = vtanh.pop %v417
        %v424 = vld [vmem:[%s2] sm:$0xff]
        %v425 = vld [vmem:[%s2 + $0x8] sm:$0xff]
        %v426 = vld [vmem:[%s2 + $0x10] sm:$0xff]
        %v427 = vld [vmem:[%s2 + $0x18] sm:$0xff]
        %429 = vset.pattern.permute.xlu0 0
        %430 = vperm.xlu0 %429, %v245
        %v431 = vpop.permute.xlu0 %430
        %434 = vset.pattern.permute.xlu0 0
        %435 = vperm.xlu0 %434, %v246
        %v436 = vpop.permute.xlu0 %435
        %439 = vset.pattern.permute.xlu0 0
        %440 = vperm.xlu0 %439, %v247
        %v441 = vpop.permute.xlu0 %440
        %444 = vset.pattern.permute.xlu0 0
        %445 = vperm.xlu0 %444, %v248
        %v446 = vpop.permute.xlu0 %445
        %v449 = vsel %vm274, %v424, 0
        %v452 = vsel %vm274, %v425, 0
        %v455 = vsel %vm274, %v426, 0
        %v458 = vsel %vm274, %v427, 0
        %460 = vmatprep.subr.mxu0 0.0
        %461 = vmatpush1.msra.mxu0 %v420
        %462 = vmatprep.subr.mxu0 0.0
        %463 = vmatpush1.msra.mxu0 %v421
        %464 = vmatprep.subr.mxu0 0.0
        %465 = vmatpush1.msra.mxu0 %v422
        %466 = vmatprep.subr.mxu0 0.0
        %467 = vmatpush1.msra.mxu0 %v423
        %468 = vmatprep.subr.mxu0 0.0
        %469 = vmatpush1.msra.mxu0 0.0
        %470 = vmatprep.subr.mxu0 0.0
        %471 = vmatpush1.msra.mxu0 0.0
        %472 = vmatprep.subr.mxu0 0.0
        %473 = vmatpush1.msra.mxu0 0.0
        %474 = vmatprep.subr.mxu0 0.0
        %475 = vmatpush1.msra.mxu0 0.0
        %476 = vmatprep.subr.mxu0 0.0
        %477 = vmatpush1.msra.mxu0 0.0
        %478 = vmatprep.subr.mxu0 0.0
        %479 = vmatpush1.msra.mxu0 0.0
        %480 = vmatprep.subr.mxu0 0.0
        %481 = vmatpush1.msra.mxu0 0.0
        %482 = vmatprep.subr.mxu0 0.0
        %483 = vmatpush1.msra.mxu0 0.0
        %484 = vmatprep.subr.mxu0 0.0
        %485 = vmatpush1.msra.mxu0 0.0
        %486 = vmatprep.subr.mxu0 0.0
        %487 = vmatpush1.msra.mxu0 0.0
        %488 = vmatprep.subr.mxu0 0.0
        %489 = vmatpush1.msra.mxu0 0.0
        %490 = vmatprep.subr.mxu0 0.0
        %491 = vmatpush1.msra.mxu0 0.0
        %492 = vmatprep.subr.mxu0 0.0
        %493 = vmatpush1.msra.mxu0 0.0
        %494 = vmatprep.subr.mxu0 0.0
        %495 = vmatpush1.msra.mxu0 0.0
        %496 = vmatprep.subr.mxu0 0.0
        %497 = vmatpush1.msra.mxu0 0.0
        %498 = vmatprep.subr.mxu0 0.0
        %499 = vmatpush1.msra.mxu0 0.0
        %500 = vmatprep.subr.mxu0 0.0
        %501 = vmatpush1.msra.mxu0 0.0
        %502 = vmatprep.subr.mxu0 0.0
        %503 = vmatpush1.msra.mxu0 0.0
        %504 = vmatprep.subr.mxu0 0.0
        %505 = vmatpush1.msra.mxu0 0.0
        %506 = vmatprep.subr.mxu0 0.0
        %507 = vmatpush1.msra.mxu0 0.0
        %508 = vmatprep.subr.mxu0 0.0
        %509 = vmatpush1.msra.mxu0 0.0
        %510 = vmatprep.subr.mxu0 0.0
        %511 = vmatpush1.msra.mxu0 0.0
        %512 = vmatprep.subr.mxu0 0.0
        %513 = vmatpush1.msra.mxu0 0.0
        %514 = vmatprep.subr.mxu0 0.0
        %515 = vmatpush1.msra.mxu0 0.0
        %516 = vmatprep.subr.mxu0 0.0
        %517 = vmatpush1.msra.mxu0 0.0
        %518 = vmatprep.subr.mxu0 0.0
        %519 = vmatpush1.msra.mxu0 0.0
        %520 = vmatprep.subr.mxu0 0.0
        %521 = vmatpush1.msra.mxu0 0.0
        %522 = vmatprep.subr.mxu0 0.0
        %523 = vmatpush1.msra.mxu0 0.0
        %524 = vmatprep.mubr.f32.mxu0 0.0
        %525 = vmatmul.mubr.f32.gmra.mrb[0].mxu0 %v449
        %v526 = vpop.f32.mrb[0].mxu0
        %v527 = vadd.f32 %v431, %v526
        %v528 = vpop.f32.mrb[0].mxu0
        %529 = vmatprep.mubr.f32.mxu0 0.0
        %530 = vmatmul.mubr.f32.gmra.mrb[0].mxu0 %v452
        %v531 = vpop.f32.mrb[0].mxu0
        %v532 = vadd.f32 %v436, %v531
        %v533 = vpop.f32.mrb[0].mxu0
        %534 = vmatprep.mubr.f32.mxu0 0.0
        %535 = vmatmul.mubr.f32.gmra.mrb[0].mxu0 %v455
        %v536 = vpop.f32.mrb[0].mxu0
        %v537 = vadd.f32 %v441, %v536
        %v538 = vpop.f32.mrb[0].mxu0
        %539 = vmatprep.mubr.f32.mxu0 0.0
        %540 = vmatmul.mubr.f32.gmra.mrb[0].mxu0 %v458
        %v541 = vpop.f32.mrb[0].mxu0
        %v542 = vadd.f32 %v446, %v541
        %v543 = vpop.f32.mrb[0].mxu0
        %544 = vdwg.mxu0
        %v545 = vtanh.pop %v527
        %v546 = vtanh.pop %v532
        %v547 = vtanh.pop %v537
        %v548 = vtanh.pop %v542
        %v549 = vld [vmem:[%s3] sm:$0xf]
        %551 = vset.pattern.permute.xlu0 0
        %552 = vperm.xlu0 %551, %v249
        %v553 = vpop.permute.xlu0 %552
        %v556 = vsel %vm274, %v549, 0
        %558 = vmatprep.subr.mxu0 0.0
        %559 = vmatpush1.msra.mxu0 %v545
        %560 = vmatprep.subr.mxu0 0.0
        %561 = vmatpush1.msra.mxu0 %v546
        %562 = vmatprep.subr.mxu0 0.0
        %563 = vmatpush1.msra.mxu0 %v547
        %564 = vmatprep.subr.mxu0 0.0
        %565 = vmatpush1.msra.mxu0 %v548
        %566 = vmatprep.subr.mxu0 0.0
        %567 = vmatpush1.msra.mxu0 0.0
        %568 = vmatprep.subr.mxu0 0.0
        %569 = vmatpush1.msra.mxu0 0.0
        %570 = vmatprep.subr.mxu0 0.0
        %571 = vmatpush1.msra.mxu0 0.0
        %572 = vmatprep.subr.mxu0 0.0
        %573 = vmatpush1.msra.mxu0 0.0
        %574 = vmatprep.subr.mxu0 0.0
        %575 = vmatpush1.msra.mxu0 0.0
        %576 = vmatprep.subr.mxu0 0.0
        %577 = vmatpush1.msra.mxu0 0.0
        %578 = vmatprep.subr.mxu0 0.0
        %579 = vmatpush1.msra.mxu0 0.0
        %580 = vmatprep.subr.mxu0 0.0
        %581 = vmatpush1.msra.mxu0 0.0
        %582 = vmatprep.subr.mxu0 0.0
        %583 = vmatpush1.msra.mxu0 0.0
        %584 = vmatprep.subr.mxu0 0.0
        %585 = vmatpush1.msra.mxu0 0.0
        %586 = vmatprep.subr.mxu0 0.0
        %587 = vmatpush1.msra.mxu0 0.0
        %588 = vmatprep.subr.mxu0 0.0
        %589 = vmatpush1.msra.mxu0 0.0
        %590 = vmatprep.subr.mxu0 0.0
        %591 = vmatpush1.msra.mxu0 0.0
        %592 = vmatprep.subr.mxu0 0.0
        %593 = vmatpush1.msra.mxu0 0.0
        %594 = vmatprep.subr.mxu0 0.0
        %595 = vmatpush1.msra.mxu0 0.0
        %596 = vmatprep.subr.mxu0 0.0
        %597 = vmatpush1.msra.mxu0 0.0
        %598 = vmatprep.subr.mxu0 0.0
        %599 = vmatpush1.msra.mxu0 0.0
        %600 = vmatprep.subr.mxu0 0.0
        %601 = vmatpush1.msra.mxu0 0.0
        %602 = vmatprep.subr.mxu0 0.0
        %603 = vmatpush1.msra.mxu0 0.0
        %604 = vmatprep.subr.mxu0 0.0
        %605 = vmatpush1.msra.mxu0 0.0
        %606 = vmatprep.subr.mxu0 0.0
        %607 = vmatpush1.msra.mxu0 0.0
        %608 = vmatprep.subr.mxu0 0.0
        %609 = vmatpush1.msra.mxu0 0.0
        %610 = vmatprep.subr.mxu0 0.0
        %611 = vmatpush1.msra.mxu0 0.0
        %612 = vmatprep.subr.mxu0 0.0
        %613 = vmatpush1.msra.mxu0 0.0
        %614 = vmatprep.subr.mxu0 0.0
        %615 = vmatpush1.msra.mxu0 0.0
        %616 = vmatprep.subr.mxu0 0.0
        %617 = vmatpush1.msra.mxu0 0.0
        %618 = vmatprep.subr.mxu0 0.0
        %619 = vmatpush1.msra.mxu0 0.0
        %620 = vmatprep.subr.mxu0 0.0
        %621 = vmatpush1.msra.mxu0 0.0
        %622 = vmatprep.mubr.f32.mxu0 0.0
        %623 = vmatmul.mubr.f32.gmra.mrb[0].mxu0 %v556
        %v624 = vpop.f32.mrb[0].mxu0
        %v625 = vadd.f32 %v553, %v624
        %v626 = vpop.f32.mrb[0].mxu0
        %627 = vdwg.mxu0
        %628 = vst [vmem:[%s218] sm:$0xf] %v625
        %s629 = sand.u32 %s137, 1
        %s630 = scalar_lea.sflag [#allocation3], %s629
        %s631 = sand.u32 %s137, 1
        %s632 = smul.addr %s631, 4
        %s633 = scalar_lea.vmem [#allocation2], %s632
        // Predicated region
        $region41: #{tpu_custom_call.1} parent=39 // pred_check
          %p634 = pneg %p147
        $region42: #{tpu_custom_call.1} parent=39 // pred_check_branch
          %636 = sbr.rel (%p634) target = $region44
        $region43: #{tpu_custom_call.1} parent=39 // pred_region
          %s638 = ssub.s32 64, 64
          %639 = vsyncadd %s630, %s638
          %s640 = smul.addr %s19, 64
          %s641 = scalar_lea.hbm %s5, %s640
          %s643 = sshll.u32 %s633, 4
          %s644 = int_to_ptr.vmem [resolvable:$true] %s643
          %646 = dma.vmem_to_hbm [thread:$0]  %s644, 64, %s641, %s630
        $region44: #{tpu_custom_call.1} parent=39 // pred_fallthru
          _
      $region40: #{tpu_custom_call.1} parent=5 // pred_fallthru
        _
      %p647 = scmp.le.s32.totalorder 2, %s14
      // Predicated region
      $region45: #{tpu_custom_call.1} parent=5 // pred_check
        %p648 = pneg %p647
      $region46: #{tpu_custom_call.1} parent=5 // pred_check_branch
        %650 = sbr.rel (%p648) target = $region48
      $region47: #{tpu_custom_call.1} parent=5 // pred_region
        %s651 = ssub.s32 %s14, 2
        // Predicated region
        $region49: #{tpu_custom_call.1} parent=47 // pred_check
          %p652 = pneg %p153
        $region50: #{tpu_custom_call.1} parent=47 // pred_check_branch
          %654 = sbr.rel (%p652) target = $region52
        $region51: #{tpu_custom_call.1} parent=47 // pred_region
          %s655 = sand.u32 %s138, 1
          %s656 = scalar_lea.sflag [#allocation3], %s655
          %s657 = sand.u32 %s138, 1
          %s658 = smul.addr %s657, 4
          %s659 = scalar_lea.vmem [#allocation2], %s658
          %660 = dma.done %s656, 64
        $region52: #{tpu_custom_call.1} parent=47 // pred_fallthru
          _
      $region48: #{tpu_custom_call.1} parent=5 // pred_fallthru
        _
    $region6: #{tpu_custom_call.1} parent=1 // loop_footer
      %s18 = sadd.s32 1, %s14
    $region7: #{tpu_custom_call.1} parent=1 // loop_footer_branch
      %13 = sbr.rel target = $region3
    $region8: #{tpu_custom_call.1} parent=1 // loop_exit
      _
    %661 = vsyncpa [#allocation3], 1
    %s662 = scalar_lea.sflag [#allocation3], 1
    %663 = vsyncpa %s662, 1

</llo_original>
